<compile_context>
chip_gen: v6e
topology: v6e:2x2x1
jax: 0.10.0
libtpu: 0.0.40
codegen_flags: <defaults>
</compile_context>

<pallas_src>
import math

import jax
import jax.numpy as jnp
import numpy as np
from jax.experimental import pallas as pl
from jax.experimental.pallas import tpu as pltpu

LANE = 128  # TPU lane width; outputs / weights are padded to this.


# ----------------------------------------------------------------------------
# Pallas kernel: fused (conv-as-GEMM) + bias + 2x2 maxpool + ReLU
# ----------------------------------------------------------------------------
def conv_pool_relu_kernel(p_ref, w_ref, b_ref, o_ref):
    # p_ref: (4, TM, Kp)  -- im2col patches for the 4 positions of each 2x2
    #                        pooling window (same pooled output row).
    # w_ref: (Kp, 128)    -- flattened conv weights, zero-padded to 128 lanes.
    # b_ref: (1, 128)     -- bias, zero-padded to 128 lanes.
    # o_ref: (TM, 128)    -- pooled + ReLU'd output rows (lane-dense).
    tm = o_ref.shape[0]
    kp = w_ref.shape[0]

    # Single fused MXU call instead of four tiny ones.  The reshapes only
    # merge / split leading tile-aligned dims (TM % 8 == 0, Kp % 128 == 0),
    # so they are layout no-ops.
    p = p_ref[...].reshape(4 * tm, kp)
    c = jnp.dot(p, w_ref[...], preferred_element_type=jnp.float32)   # (4*TM, 128)
    c = c.reshape(4, tm, LANE)

    pooled = jnp.maximum(jnp.maximum(c[0], c[1]), jnp.maximum(c[2], c[3]))
    # Per-output-channel bias commutes with max-pool, so add it after the pool.
    o_ref[...] = jnp.maximum(pooled + b_ref[...], 0.0).astype(o_ref.dtype)


# ----------------------------------------------------------------------------
# Glue: im2col for a VALID conv immediately followed by a 2x2/stride-2 maxpool
# ----------------------------------------------------------------------------
def _im2col_pool_patches(x_nhwc, KH, KW, Hp, Wp):
    """x_nhwc: (N, H, W, Cin) -> (4, N*Hp*Wp, KH*KW*Cin).

    Axis 0 enumerates the 2x2 pool-window offsets (oy, ox); each slice holds
    the im2col patches of the stride-2 conv positions for that offset.
    """
    N, _, _, Cin = x_nhwc.shape
    groups = []
    for oy in range(2):
        for ox in range(2):
            cols = []
            for ky in range(KH):
                for kx in range(KW):
                    sl = x_nhwc[:,
                                oy + ky: oy + ky + 2 * Hp: 2,
                                ox + kx: ox + kx + 2 * Wp: 2,
                                :]                       # (N, Hp, Wp, Cin)
                    cols.append(sl)
            p = jnp.stack(cols, axis=3)                  # (N, Hp, Wp, KH*KW, Cin)
            groups.append(p.reshape(N * Hp * Wp, KH * KW * Cin))
    return jnp.stack(groups, axis=0)                     # (4, M, K)


def _round_up(x, m):
    return ((x + m - 1) // m) * m


def _choose_tiling(M, max_tm=512):
    """Pick (tm, Mp, grid) with an even number (>=2) of large grid steps.

    >=2 even steps keep both v7x TensorCores busy via the 'parallel' axis;
    large tm amortizes the ~0.35us per-grid-step overhead.  tm is a multiple
    of 8 so blocks stay sublane-aligned.
    """
    g = max(2, pl.cdiv(M, max_tm))
    if g % 2:
        g += 1
    tm = _round_up(pl.cdiv(M, g), 8)
    return tm, tm * g, g


# ----------------------------------------------------------------------------
# One fused layer: conv(valid) -> maxpool(2) -> relu
# ----------------------------------------------------------------------------
def conv_pool_relu_layer(x_nhwc, w, b, *, max_tm=512):
    # x_nhwc: (N, H, W, Cin); w: (KH, KW, Cin, Cout); b: (Cout,)
    N, H, W, Cin = x_nhwc.shape
    KH, KW, _, Cout = w.shape
    Hp = (H - KH + 1) // 2
    Wp = (W - KW + 1) // 2
    K = KH * KW * Cin
    Kp = _round_up(K, LANE)
    M = N * Hp * Wp
    tm, Mp, g = _choose_tiling(M, max_tm)

    patches = _im2col_pool_patches(x_nhwc, KH, KW, Hp, Wp)       # (4, M, K)
    patches = jnp.pad(patches, ((0, 0), (0, Mp - M), (0, Kp - K)))

    # Zero-pad K and Cout; padded K rows contribute 0 to the dot, padded output
    # channels come out as relu(0 + 0) = 0 and are sliced off below.
    w_flat = jnp.pad(w.reshape(K, Cout), ((0, Kp - K), (0, LANE - Cout)))
    b_pad = jnp.pad(b.reshape(1, Cout), ((0, 0), (0, LANE - Cout)))

    out = pl.pallas_call(
        conv_pool_relu_kernel,
        out_shape=jax.ShapeDtypeStruct((Mp, LANE), jnp.float32),
        grid_spec=pltpu.PrefetchScalarGridSpec(
            num_scalar_prefetch=0,
            grid=(g,),
            in_specs=[
                pl.BlockSpec((4, tm, Kp), lambda i: (0, i, 0)),
                pl.BlockSpec((Kp, LANE), lambda i: (0, 0)),
                pl.BlockSpec((1, LANE), lambda i: (0, 0)),
            ],
            out_specs=pl.BlockSpec((tm, LANE), lambda i: (i, 0)),
        ),
        compiler_params=pltpu.CompilerParams(
            dimension_semantics=("parallel",)),
    )(patches, w_flat, b_pad)

    return out[:M, :Cout].reshape(N, Hp, Wp, Cout)


# ----------------------------------------------------------------------------
# Full forward (matches CNN.forward)
# ----------------------------------------------------------------------------
def cnn_forward(x_nchw, w1, b1, w2, b2):
    N = x_nchw.shape[0]
    x = jnp.transpose(x_nchw, (0, 2, 3, 1))          # NCHW -> NHWC
    y = conv_pool_relu_layer(x, w1, b1)              # (N, 12, 12, 10)
    # TODO(synk): nn.Dropout2d is identity in eval mode; training-mode stochastic
    #             channel dropout is not implemented here.
    y = conv_pool_relu_layer(y, w2, b2)              # (N, 4, 4, 20)
    # PyTorch x.view(-1, 320) flattens an NCHW tensor -> (N, C*H*W)
    y = jnp.transpose(y, (0, 3, 1, 2)).reshape(N, -1)
    return y


# ----------------------------------------------------------------------------
# Pure-JAX (XLA) reference for correctness checking
# ----------------------------------------------------------------------------
def reference_forward(x_nchw, w1, b1, w2, b2):
    def layer(x, w, b):
        w_oihw = jnp.transpose(w, (3, 2, 0, 1))
        y = jax.lax.conv_general_dilated(
            x, w_oihw, (1, 1), "VALID",
            dimension_numbers=("NCHW", "OIHW", "NCHW"))
        y = y + b.reshape(1, -1, 1, 1)
        y = jax.lax.reduce_window(y, -jnp.inf, jax.lax.max,
                                  (1, 1, 2, 2), (1, 1, 2, 2), "VALID")
        return jnp.maximum(y, 0.0)

    y = layer(x_nchw, w1, b1)
    y = layer(y, w2, b2)
    return y.reshape(y.shape[0], -1)


if __name__ == "__main__":
    key = jax.random.PRNGKey(0)
    kx, kw1, kb1, kw2, kb2 = jax.random.split(key, 5)

    N = 2
    # Input must be (N, 3, 28, 28) so that the final view(-1, 320) is consistent.
    x = jax.random.normal(kx, (N, 3, 28, 28), jnp.float32)

    # Deterministic parameter init (PyTorch-default-like uniform(-1/sqrt(fan_in), +)).
    fan1 = 3 * 5 * 5
    bnd1 = 1.0 / math.sqrt(fan1)
    w1 = jax.random.uniform(kw1, (5, 5, 3, 10), jnp.float32, -bnd1, bnd1)
    b1 = jax.random.uniform(kb1, (10,), jnp.float32, -bnd1, bnd1)

    fan2 = 10 * 5 * 5
    bnd2 = 1.0 / math.sqrt(fan2)
    w2 = jax.random.uniform(kw2, (5, 5, 10, 20), jnp.float32, -bnd2, bnd2)
    b2 = jax.random.uniform(kb2, (20,), jnp.float32, -bnd2, bnd2)

    out = cnn_forward(x, w1, b1, w2, b2)
    out = jax.block_until_ready(out)
    assert out.shape == (N, 320), out.shape

    ref = jax.block_until_ready(reference_forward(x, w1, b1, w2, b2))
    np.testing.assert_allclose(np.asarray(out), np.asarray(ref),
                               rtol=1e-4, atol=1e-4)
    print("KERNEL_OK")
</pallas_src>

<mosaic_0001>
module attributes {stable_mosaic.version = 11 : i64} {
  func.func @conv_pool_relu_kernel(%arg0: i32, %arg1: memref<4x144x128xf32, #tpu.memory_space<vmem>>, %arg2: memref<128x128xf32, #tpu.memory_space<vmem>>, %arg3: memref<1x128xf32, #tpu.memory_space<vmem>>, %arg4: memref<144x128xf32, #tpu.memory_space<vmem>>) attributes {dimension_semantics = [#tpu.dimension_semantics<parallel>], iteration_bounds = array<i64: 2>, scalar_prefetch = 0 : i64, scratch_operands = 0 : i64, tpu.core_type = #tpu.core_type<tc>, window_params = [{transform_indices = @transform_0, window_bounds = array<i64: 4, 144, 128>}, {pipeline_mode = #tpu.pipeline_mode<synchronous>, transform_indices = @transform_1, window_bounds = array<i64: 128, 128>}, {pipeline_mode = #tpu.pipeline_mode<synchronous>, transform_indices = @transform_2, window_bounds = array<i64: 1, 128>}, {transform_indices = @transform_3, window_bounds = array<i64: 144, 128>}]} {
    %c0 = arith.constant 0 : index
    %c0_0 = arith.constant 0 : index
    %c0_1 = arith.constant 0 : index
    %0 = vector.load %arg1[%c0, %c0_0, %c0_1] : memref<4x144x128xf32, #tpu.memory_space<vmem>>, vector<4x144x128xf32>
    %1 = vector.shape_cast %0 : vector<4x144x128xf32> to vector<576x128xf32>
    %c0_2 = arith.constant 0 : index
    %c0_3 = arith.constant 0 : index
    %2 = vector.load %arg2[%c0_2, %c0_3] : memref<128x128xf32, #tpu.memory_space<vmem>>, vector<128x128xf32>
    %cst = arith.constant dense<0.000000e+00> : vector<576x128xf32>
    %3 = tpu.matmul %1, %2, %cst {dimension_numbers = #tpu.dot_dimension_numbers<[1], [0], [0], [1], [0, 0, 1, 1], [], []>} : vector<576x128xf32>, vector<128x128xf32>, vector<576x128xf32> -> vector<576x128xf32>
    %4 = vector.shape_cast %3 : vector<576x128xf32> to vector<4x144x128xf32>
    %5 = vector.extract_strided_slice %4 {offsets = [0, 0, 0], sizes = [1, 144, 128], strides = [1, 1, 1]} : vector<4x144x128xf32> to vector<1x144x128xf32>
    %6 = vector.shape_cast %5 : vector<1x144x128xf32> to vector<144x128xf32>
    %7 = vector.extract_strided_slice %4 {offsets = [1, 0, 0], sizes = [1, 144, 128], strides = [1, 1, 1]} : vector<4x144x128xf32> to vector<1x144x128xf32>
    %8 = vector.shape_cast %7 : vector<1x144x128xf32> to vector<144x128xf32>
    %9 = arith.maximumf %6, %8 : vector<144x128xf32>
    %10 = vector.extract_strided_slice %4 {offsets = [2, 0, 0], sizes = [1, 144, 128], strides = [1, 1, 1]} : vector<4x144x128xf32> to vector<1x144x128xf32>
    %11 = vector.shape_cast %10 : vector<1x144x128xf32> to vector<144x128xf32>
    %12 = vector.extract_strided_slice %4 {offsets = [3, 0, 0], sizes = [1, 144, 128], strides = [1, 1, 1]} : vector<4x144x128xf32> to vector<1x144x128xf32>
    %13 = vector.shape_cast %12 : vector<1x144x128xf32> to vector<144x128xf32>
    %14 = arith.maximumf %11, %13 : vector<144x128xf32>
    %15 = arith.maximumf %9, %14 : vector<144x128xf32>
    %c0_4 = arith.constant 0 : index
    %c0_5 = arith.constant 0 : index
    %16 = vector.load %arg3[%c0_4, %c0_5] : memref<1x128xf32, #tpu.memory_space<vmem>>, vector<1x128xf32>
    %17 = vector.broadcast %16 : vector<1x128xf32> to vector<144x128xf32>
    %18 = arith.addf %15, %17 : vector<144x128xf32>
    %cst_6 = arith.constant 0.000000e+00 : f32
    %19 = vector.broadcast %cst_6 : f32 to vector<144x128xf32>
    %20 = arith.maximumf %18, %19 : vector<144x128xf32>
    %c0_7 = arith.constant 0 : index
    %c0_8 = arith.constant 0 : index
    %21 = vector.load %arg4[%c0_7, %c0_8] : memref<144x128xf32, #tpu.memory_space<vmem>>, vector<144x128xf32>
    tpu.vector_store %arg4[%c0_7, %c0_8], %20 {strides = array<i32>} : memref<144x128xf32, #tpu.memory_space<vmem>>, vector<144x128xf32>,
    return
  }
  func.func @transform_0(%arg0: i32) -> (i32, i32, i32) {
    %c0_i32 = arith.constant 0 : i32
    %c0_i32_0 = arith.constant 0 : i32
    %c0_i32_1 = arith.constant 0 : i32
    return %c0_i32, %arg0, %c0_i32_0 : i32, i32, i32
  }
  func.func @transform_1(%arg0: i32) -> (i32, i32) {
    %c0_i32 = arith.constant 0 : i32
    %c0_i32_0 = arith.constant 0 : i32
    %c0_i32_1 = arith.constant 0 : i32
    return %c0_i32, %c0_i32_0 : i32, i32
  }
  func.func @transform_2(%arg0: i32) -> (i32, i32) {
    %c0_i32 = arith.constant 0 : i32
    %c0_i32_0 = arith.constant 0 : i32
    %c0_i32_1 = arith.constant 0 : i32
    return %c0_i32, %c0_i32_0 : i32, i32
  }
  func.func @transform_3(%arg0: i32) -> (i32, i32) {
    %c0_i32 = arith.constant 0 : i32
    %c0_i32_0 = arith.constant 0 : i32
    return %arg0, %c0_i32 : i32, i32
  }
}

</mosaic_0001>

<llo_original>
// kernel: tpu_custom_call.1
$region0: #{tpu_custom_call.1}
  #allocation0 [shape = 'u32[]', space=smem, size = 0x4, offset = 0x4, fixed_abs, tag = 'smem constant byte address 0x4 - core index']
  #allocation1 [shape = 'u32[144,128]{1,0:T(1,128)}', space=vmem, size = 0x12000, scoped, tag = 'internal scratch']
  #allocation8 [shape = 's32[]', space=sflag, size = 0x4, offset = 0, fixed_abs, tag = 'sflag constant byte address 0x0 - dummy sync flag']
  %s0 = inlined_call_operand.hbm [shape: f32[4,288,128], index: 0, kind: input, shape index: {}]
  %s1 = inlined_call_operand.hbm [shape: f32[128,128], index: 1, kind: input, shape index: {}]
  %s2 = inlined_call_operand.vmem [shape: f32[1,128], index: 2, kind: input, shape index: {}]
  %s3 = inlined_call_operand.hbm [shape: f32[288,128], index: 3, kind: output, shape index: {}]
  %s4 = sld [smem:[#allocation0]]
  $region53: #{tpu_custom_call.1} parent=0
    _
  %s6 = ssub.s32 1, %s4
  %s7 = scalar_select 0, %s6, %s4
  $region1: #{tpu_custom_call.1} parent=0
    #allocation2 [shape = 'u8[589824]{0}', space=vmem, size = 0x90000, scoped, tag = 'input window, operand 0']
    #allocation3 [shape = 's32[2]{0}', space=sflag, size = 0x8, scoped, tag = 'scoped memory for tpu_custom_call.1']
    #allocation4 [shape = 's32[2]{0}', space=sflag, size = 0x8, scoped, tag = 'scoped memory for tpu_custom_call.1']
    #allocation5 [shape = 'u8[65536]{0}', space=vmem, size = 0x10000, scoped, tag = 'input window, operand 1, single buffered']
    #allocation6 [shape = 's32[1]{0}', space=sflag, size = 0x4, scoped, tag = 'scoped memory for tpu_custom_call.1']
    #allocation7 [shape = 'u8[147456]{0}', space=vmem, size = 0x24000, scoped, tag = 'output window, operand 0']
    %8 = vsyncpa [#allocation3], 0
    %s9 = scalar_lea.sflag [#allocation3], 1
    %10 = vsyncpa %s9, 0
    %11 = vsyncpa [#allocation6], 0
    %12 = vsyncpa [#allocation4], 0
    %s13 = scalar_lea.sflag [#allocation4], 1
    %14 = vsyncpa %s13, 0
    loop: start=0, step=1, limit=4
    $region2: #{tpu_custom_call.1} parent=1 // loop_pre_header
      _
    $region3: #{tpu_custom_call.1} parent=1 // loop_header
      %s16 = sphi 0, %s20
      %p17 = scmp.ge.s32.totalorder %s16, 4
      %s26 = sphi 0, %s28
      %s29 = sphi 0, %s26
      %s30 = sphi 0, %s29
      %s46 = sphi 0, %s30
      %s50 = sphi 0, %s50
      %s52 = sphi 0, %s50
      %s53 = sphi 0, %s52
      %s67 = sphi 0, %s53
      %s71 = sphi 0, %s71
      %s73 = sphi 0, %s71
      %s74 = sphi 0, %s73
      %s88 = sphi 0, %s74
      %s94 = sphi 0, %s96
      %s97 = sphi 0, %s94
      %s98 = sphi 0, %s97
      %s114 = sphi 0, %s98
    $region4: #{tpu_custom_call.1} parent=1 // loop_header_branch
      %19 = sbr.rel (%p17) target = $region8
    $region5: #{tpu_custom_call.1} parent=1 // loop_body
      %s21 = ssub.s32 %s16, 1
      %s22 = ssub.s32 %s16, 2
      %s23 = sadd.s32 %s16, 1
      %s24 = ssub.s32 %s16, %s23
      %p25 = scmp.eq.s32.totalorder %s24, 0
      %s27 = sadd.s32 %s26, 1
      %s28 = scalar_select %p25, %s26, %s27
      %p31 = pneg %p25
      %p32 = scmp.eq.s32.totalorder %s16, 1
      %p33 = por %p31, %p32
      %p34 = scmp.ne.s32.totalorder %s26, %s29
      %p35 = scmp.eq.s32.totalorder %s16, 0
      %p36 = por %p34, %p35
      %p37 = scmp.ne.s32.totalorder %s26, %s29
      %p38 = scmp.eq.s32.totalorder %s21, 1
      %p39 = por %p37, %p38
      %p40 = scmp.ne.s32.totalorder %s29, %s30
      %p41 = scmp.eq.s32.totalorder %s21, 0
      %p42 = por %p40, %p41
      %p43 = scmp.ne.s32.totalorder %s29, %s30
      %p44 = scmp.eq.s32.totalorder %s22, 1
      %p45 = por %p43, %p44
      %p47 = scmp.ne.s32.totalorder %s30, %s46
      %p48 = scmp.eq.s32.totalorder %s22, 0
      %p49 = por %p47, %p48
      %s51 = sadd.s32 %s50, 1
      %p54 = scmp.eq.s32.totalorder %s16, 1
      %p55 = scmp.ne.s32.totalorder %s50, %s52
      %p56 = scmp.eq.s32.totalorder %s16, 0
      %p57 = por %p55, %p56
      %p58 = scmp.ne.s32.totalorder %s50, %s52
      %p59 = scmp.eq.s32.totalorder %s21, 1
      %p60 = por %p58, %p59
      %p61 = scmp.ne.s32.totalorder %s52, %s53
      %p62 = scmp.eq.s32.totalorder %s21, 0
      %p63 = por %p61, %p62
      %p64 = scmp.ne.s32.totalorder %s52, %s53
      %p65 = scmp.eq.s32.totalorder %s22, 1
      %p66 = por %p64, %p65
      %p68 = scmp.ne.s32.totalorder %s53, %s67
      %p69 = scmp.eq.s32.totalorder %s22, 0
      %p70 = por %p68, %p69
      %s72 = sadd.s32 %s71, 1
      %p75 = scmp.eq.s32.totalorder %s16, 1
      %p76 = scmp.ne.s32.totalorder %s71, %s73
      %p77 = scmp.eq.s32.totalorder %s16, 0
      %p78 = por %p76, %p77
      %p79 = scmp.ne.s32.totalorder %s71, %s73
      %p80 = scmp.eq.s32.totalorder %s21, 1
      %p81 = por %p79, %p80
      %p82 = scmp.ne.s32.totalorder %s73, %s74
      %p83 = scmp.eq.s32.totalorder %s21, 0
      %p84 = por %p82, %p83
      %p85 = scmp.ne.s32.totalorder %s73, %s74
      %p86 = scmp.eq.s32.totalorder %s22, 1
      %p87 = por %p85, %p86
      %p89 = scmp.ne.s32.totalorder %s74, %s88
      %p90 = scmp.eq.s32.totalorder %s22, 0
      %p91 = por %p89, %p90
      %s92 = ssub.s32 %s16, %s23
      %p93 = scmp.eq.s32.totalorder %s92, 0
      %s95 = sadd.s32 %s94, 1
      %s96 = scalar_select %p93, %s94, %s95
      %p99 = pneg %p93
      %p100 = scmp.eq.s32.totalorder %s16, 1
      %p101 = por %p99, %p100
      %p102 = scmp.ne.s32.totalorder %s94, %s97
      %p103 = scmp.eq.s32.totalorder %s16, 0
      %p104 = por %p102, %p103
      %p105 = scmp.ne.s32.totalorder %s94, %s97
      %p106 = scmp.eq.s32.totalorder %s21, 1
      %p107 = por %p105, %p106
      %p108 = scmp.ne.s32.totalorder %s97, %s98
      %p109 = scmp.eq.s32.totalorder %s21, 0
      %p110 = por %p108, %p109
      %p111 = scmp.ne.s32.totalorder %s97, %s98
      %p112 = scmp.eq.s32.totalorder %s22, 1
      %p113 = por %p111, %p112
      %p115 = scmp.ne.s32.totalorder %s98, %s114
      %p116 = scmp.eq.s32.totalorder %s22, 0
      %p117 = por %p115, %p116
      %p118 = scmp.le.s32.totalorder 1, %s16
      %p119 = scmp.lt.s32.totalorder %s16, 3
      %p120 = pnand %p118, %p119
      %p121 = pneg %p120
      // Predicated region
      $region9: #{tpu_custom_call.1} parent=5 // pred_check
        _
      $region10: #{tpu_custom_call.1} parent=5 // pred_check_branch
        %123 = sbr.rel (%p120) target = $region12
      $region11: #{tpu_custom_call.1} parent=5 // pred_region
        %s124 = ssub.s32 %s16, 1
        // Predicated region
        $region13: #{tpu_custom_call.1} parent=11 // pred_check
          %p125 = pneg %p63
        $region14: #{tpu_custom_call.1} parent=11 // pred_check_branch
          %127 = sbr.rel (%p125) target = $region16
        $region15: #{tpu_custom_call.1} parent=11 // pred_region
          %s129 = ssub.s32 2048, 2048
          %130 = vsyncadd [#allocation6], %s129
          %s131 = sshll.u32 [#allocation5], 4
          %s132 = int_to_ptr.vmem [resolvable:$true] %s131
          %137 = dma.hbm_to_vmem [thread:$0]  %s1, 2048, %s132, [#allocation6], 128, 128, 8
        $region16: #{tpu_custom_call.1} parent=11 // pred_fallthru
          _
        // Predicated region
        $region17: #{tpu_custom_call.1} parent=11 // pred_check
          %p138 = pneg %p84
        $region18: #{tpu_custom_call.1} parent=11 // pred_check_branch
          %140 = sbr.rel (%p138) target = $region20
        $region19: #{tpu_custom_call.1} parent=11 // pred_region
          _
        $region20: #{tpu_custom_call.1} parent=11 // pred_fallthru
          _
      $region12: #{tpu_custom_call.1} parent=5 // pred_fallthru
        _
      %p141 = scmp.lt.s32.totalorder %s16, 2
      // Predicated region
      $region21: #{tpu_custom_call.1} parent=5 // pred_check
        %p142 = pneg %p141
      $region22: #{tpu_custom_call.1} parent=5 // pred_check_branch
        %144 = sbr.rel (%p142) target = $region24
      $region23: #{tpu_custom_call.1} parent=5 // pred_region
        // Predicated region
        $region25: #{tpu_custom_call.1} parent=23 // pred_check
          %p145 = pneg %p36
        $region26: #{tpu_custom_call.1} parent=23 // pred_check_branch
          %147 = sbr.rel (%p145) target = $region28
        $region27: #{tpu_custom_call.1} parent=23 // pred_region
          #allocation9 [shape = 'u32[6]{0}', space=smem, size = 0x18, scoped, tag = 'DMA stride descriptor']
          %s148 = sand.u32 %s26, 1
          %s149 = scalar_lea.sflag [#allocation3], %s148
          %s150 = sand.u32 %s26, 1
          %s151 = smul.addr %s150, 576
          %s152 = scalar_lea.vmem [#allocation2], %s151
          %s153 = smul.u32 18, %s16
          %s155 = ssub.s32 9216, 9216
          %156 = vsyncadd %s149, %s155
          %s157 = smul.addr %s153, 128
          %s158 = scalar_lea.hbm %s0, %s157
          %s160 = sshll.u32 1, 14
          %s161 = sxor.u32 4294967295, %s160
          %s163 = sld [smem:[#allocation0]]
          %s164 = sadd.s32 2, %s163
          %s166 = sshll.u32 7, 26
          %s167 = sxor.u32 4294967295, %s166
          %s168 = sand.u32 0, %s167
          %s169 = sshll.u32 %s164, 26
          %s170 = sor.u32 %s168, %s169
          %s171 = sshll.u32 %s152, 4
          %s172 = int_to_ptr.vmem [resolvable:$true] %s171
          %178 = sst [smem:[#allocation9]] 4608
          %s179 = scalar_lea.smem [#allocation9], 1
          %180 = sst [smem:[%s179]] 2304
          %s181 = scalar_lea.smem [#allocation9], 2
          %182 = sst [smem:[%s181]] 18
          %s183 = scalar_lea.smem [#allocation9], 3
          %184 = sst [smem:[%s183]] 128
          %s185 = scalar_lea.smem [#allocation9], 4
          %186 = sst [smem:[%s185]] 128
          %s187 = scalar_lea.smem [#allocation9], 5
          %188 = sst [smem:[%s187]] 8
          %190 = dma.general %s158, 9216, %s172, %s149, 131072, [#allocation9], %s170, 0
        $region28: #{tpu_custom_call.1} parent=23 // pred_fallthru
          _
      $region24: #{tpu_custom_call.1} parent=5 // pred_fallthru
        _
      %p191 = scmp.le.s32.totalorder 1, %s16
      %p192 = scmp.lt.s32.totalorder %s16, 3
      %p193 = pnand %p191, %p192
      %p194 = pneg %p193
      // Predicated region
      $region29: #{tpu_custom_call.1} parent=5 // pred_check
        _
      $region30: #{tpu_custom_call.1} parent=5 // pred_check_branch
        %196 = sbr.rel (%p193) target = $region32
      $region31: #{tpu_custom_call.1} parent=5 // pred_region
        %s197 = ssub.s32 %s16, 1
        %s198 = sand.u32 %s29, 1
        %s199 = scalar_lea.sflag [#allocation3], %s198
        %s200 = sand.u32 %s29, 1
        %s201 = smul.addr %s200, 576
        %s202 = scalar_lea.vmem [#allocation2], %s201
        // Predicated region
        $region33: #{tpu_custom_call.1} parent=31 // pred_check
          %p203 = pneg %p42
        $region34: #{tpu_custom_call.1} parent=31 // pred_check_branch
          %205 = sbr.rel (%p203) target = $region36
        $region35: #{tpu_custom_call.1} parent=31 // pred_region
          %206 = dma.done %s199, 9216
        $region36: #{tpu_custom_call.1} parent=31 // pred_fallthru
          _
        // Predicated region
        $region37: #{tpu_custom_call.1} parent=31 // pred_check
          %p207 = pneg %p63
        $region38: #{tpu_custom_call.1} parent=31 // pred_check_branch
          %209 = sbr.rel (%p207) target = $region40
        $region39: #{tpu_custom_call.1} parent=31 // pred_region
          %210 = dma.done [#allocation6], 2048
        $region40: #{tpu_custom_call.1} parent=31 // pred_fallthru
          _
        %s211 = sand.u32 %s29, 1
        %s212 = scalar_lea.sflag [#allocation3], %s211
        %s213 = sand.u32 %s29, 1
        %s214 = smul.addr %s213, 576
        %s215 = scalar_lea.vmem [#allocation2], %s214
        %p216 = pneg %p42
        %p217 = pneg %p39
        %p218 = pneg %p63
        %p219 = pneg %p60
        %p220 = pneg %p84
        %p221 = pneg %p81
        %p222 = pneg %p110
        %p223 = pneg %p107
        %s224 = sand.u32 %s97, 1
        %s225 = scalar_lea.sflag [#allocation4], %s224
        %s226 = sand.u32 %s97, 1
        %s227 = smul.addr %s226, 144
        %s228 = scalar_lea.vmem [#allocation7], %s227
        %s229 = smul.u32 18, %s21
        %s230 = smul.u32 18, %s21
        %v231 = vld [vmem:[%s202] sm:$0xff]
        %v232 = vld [vmem:[%s202 + $0x8] sm:$0xff]
        %v233 = vld [vmem:[%s202 + $0x10] sm:$0xff]
        %v234 = vld [vmem:[%s202 + $0x18] sm:$0xff]
        %v235 = vld [vmem:[%s202 + $0x20] sm:$0xff]
        %v236 = vld [vmem:[%s202 + $0x28] sm:$0xff]
        %v237 = vld [vmem:[%s202 + $0x30] sm:$0xff]
        %v238 = vld [vmem:[%s202 + $0x38] sm:$0xff]
        %v239 = vld [vmem:[%s202 + $0x40] sm:$0xff]
        %v240 = vld [vmem:[%s202 + $0x48] sm:$0xff]
        %v241 = vld [vmem:[%s202 + $0x50] sm:$0xff]
        %v242 = vld [vmem:[%s202 + $0x58] sm:$0xff]
        %v243 = vld [vmem:[%s202 + $0x60] sm:$0xff]
        %v244 = vld [vmem:[%s202 + $0x68] sm:$0xff]
        %v245 = vld [vmem:[%s202 + $0x70] sm:$0xff]
        %v246 = vld [vmem:[%s202 + $0x78] sm:$0xff]
        %v247 = vld [vmem:[%s202 + $0x80] sm:$0xff]
        %v248 = vld [vmem:[%s202 + $0x88] sm:$0xff]
        %v249 = vld [vmem:[%s202 + $0x90] sm:$0xff]
        %v250 = vld [vmem:[%s202 + $0x98] sm:$0xff]
        %v251 = vld [vmem:[%s202 + $0xa0] sm:$0xff]
        %v252 = vld [vmem:[%s202 + $0xa8] sm:$0xff]
        %v253 = vld [vmem:[%s202 + $0xb0] sm:$0xff]
        %v254 = vld [vmem:[%s202 + $0xb8] sm:$0xff]
        %v255 = vld [vmem:[%s202 + $0xc0] sm:$0xff]
        %v256 = vld [vmem:[%s202 + $0xc8] sm:$0xff]
        %v257 = vld [vmem:[%s202 + $0xd0] sm:$0xff]
        %v258 = vld [vmem:[%s202 + $0xd8] sm:$0xff]
        %v259 = vld [vmem:[%s202 + $0xe0] sm:$0xff]
        %v260 = vld [vmem:[%s202 + $0xe8] sm:$0xff]
        %v261 = vld [vmem:[%s202 + $0xf0] sm:$0xff]
        %v262 = vld [vmem:[%s202 + $0xf8] sm:$0xff]
        %v263 = vld [vmem:[%s202 + $0x100] sm:$0xff]
        %v264 = vld [vmem:[%s202 + $0x108] sm:$0xff]
        %v265 = vld [vmem:[%s202 + $0x110] sm:$0xff]
        %v266 = vld [vmem:[%s202 + $0x118] sm:$0xff]
        %v267 = vld [vmem:[%s202 + $0x120] sm:$0xff]
        %v268 = vld [vmem:[%s202 + $0x128] sm:$0xff]
        %v269 = vld [vmem:[%s202 + $0x130] sm:$0xff]
        %v270 = vld [vmem:[%s202 + $0x138] sm:$0xff]
        %v271 = vld [vmem:[%s202 + $0x140] sm:$0xff]
        %v272 = vld [vmem:[%s202 + $0x148] sm:$0xff]
        %v273 = vld [vmem:[%s202 + $0x150] sm:$0xff]
        %v274 = vld [vmem:[%s202 + $0x158] sm:$0xff]
        %v275 = vld [vmem:[%s202 + $0x160] sm:$0xff]
        %v276 = vld [vmem:[%s202 + $0x168] sm:$0xff]
        %v277 = vld [vmem:[%s202 + $0x170] sm:$0xff]
        %v278 = vld [vmem:[%s202 + $0x178] sm:$0xff]
        %v279 = vld [vmem:[%s202 + $0x180] sm:$0xff]
        %v280 = vld [vmem:[%s202 + $0x188] sm:$0xff]
        %v281 = vld [vmem:[%s202 + $0x190] sm:$0xff]
        %v282 = vld [vmem:[%s202 + $0x198] sm:$0xff]
        %v283 = vld [vmem:[%s202 + $0x1a0] sm:$0xff]
        %v284 = vld [vmem:[%s202 + $0x1a8] sm:$0xff]
        %v285 = vld [vmem:[%s202 + $0x1b0] sm:$0xff]
        %v286 = vld [vmem:[%s202 + $0x1b8] sm:$0xff]
        %v287 = vld [vmem:[%s202 + $0x1c0] sm:$0xff]
        %v288 = vld [vmem:[%s202 + $0x1c8] sm:$0xff]
        %v289 = vld [vmem:[%s202 + $0x1d0] sm:$0xff]
        %v290 = vld [vmem:[%s202 + $0x1d8] sm:$0xff]
        %v291 = vld [vmem:[%s202 + $0x1e0] sm:$0xff]
        %v292 = vld [vmem:[%s202 + $0x1e8] sm:$0xff]
        %v293 = vld [vmem:[%s202 + $0x1f0] sm:$0xff]
        %v294 = vld [vmem:[%s202 + $0x1f8] sm:$0xff]
        %v295 = vld [vmem:[%s202 + $0x200] sm:$0xff]
        %v296 = vld [vmem:[%s202 + $0x208] sm:$0xff]
        %v297 = vld [vmem:[%s202 + $0x210] sm:$0xff]
        %v298 = vld [vmem:[%s202 + $0x218] sm:$0xff]
        %v299 = vld [vmem:[%s202 + $0x220] sm:$0xff]
        %v300 = vld [vmem:[%s202 + $0x228] sm:$0xff]
        %v301 = vld [vmem:[%s202 + $0x230] sm:$0xff]
        %v302 = vld [vmem:[%s202 + $0x238] sm:$0xff]
        %v303 = vld [vmem:[#allocation5] sm:$0xff]
        %v304 = vld [vmem:[#allocation5 + $0x8] sm:$0xff]
        %v305 = vld [vmem:[#allocation5 + $0x10] sm:$0xff]
        %v306 = vld [vmem:[#allocation5 + $0x18] sm:$0xff]
        %v307 = vld [vmem:[#allocation5 + $0x20] sm:$0xff]
        %v308 = vld [vmem:[#allocation5 + $0x28] sm:$0xff]
        %v309 = vld [vmem:[#allocation5 + $0x30] sm:$0xff]
        %v310 = vld [vmem:[#allocation5 + $0x38] sm:$0xff]
        %v311 = vld [vmem:[#allocation5 + $0x40] sm:$0xff]
        %v312 = vld [vmem:[#allocation5 + $0x48] sm:$0xff]
        %v313 = vld [vmem:[#allocation5 + $0x50] sm:$0xff]
        %v314 = vld [vmem:[#allocation5 + $0x58] sm:$0xff]
        %v315 = vld [vmem:[#allocation5 + $0x60] sm:$0xff]
        %v316 = vld [vmem:[#allocation5 + $0x68] sm:$0xff]
        %v317 = vld [vmem:[#allocation5 + $0x70] sm:$0xff]
        %v318 = vld [vmem:[#allocation5 + $0x78] sm:$0xff]
        %319 = vmatprep.subr.mxu0 0.0
        %320 = vmatpush1.msra.mxu0 %v318
        %321 = vmatprep.subr.mxu0 0.0
        %322 = vmatpush1.msra.mxu0 %v317
        %323 = vmatprep.subr.mxu0 0.0
        %324 = vmatpush1.msra.mxu0 %v316
        %325 = vmatprep.subr.mxu0 0.0
        %326 = vmatpush1.msra.mxu0 %v315
        %327 = vmatprep.subr.mxu0 0.0
        %328 = vmatpush1.msra.mxu0 %v314
        %329 = vmatprep.subr.mxu0 0.0
        %330 = vmatpush1.msra.mxu0 %v313
        %331 = vmatprep.subr.mxu0 0.0
        %332 = vmatpush1.msra.mxu0 %v312
        %333 = vmatprep.subr.mxu0 0.0
        %334 = vmatpush1.msra.mxu0 %v311
        %335 = vmatprep.subr.mxu0 0.0
        %336 = vmatpush1.msra.mxu0 %v310
        %337 = vmatprep.subr.mxu0 0.0
        %338 = vmatpush1.msra.mxu0 %v309
        %339 = vmatprep.subr.mxu0 0.0
        %340 = vmatpush1.msra.mxu0 %v308
        %341 = vmatprep.subr.mxu0 0.0
        %342 = vmatpush1.msra.mxu0 %v307
        %343 = vmatprep.subr.mxu0 0.0
        %344 = vmatpush1.msra.mxu0 %v306
        %345 = vmatprep.subr.mxu0 0.0
        %346 = vmatpush1.msra.mxu0 %v305
        %347 = vmatprep.subr.mxu0 0.0
        %348 = vmatpush1.msra.mxu0 %v304
        %349 = vmatprep.subr.mxu0 0.0
        %350 = vmatpush1.msra.mxu0 %v303
        %351 = vmatprep.subr.mxu0 0.0
        %352 = vmatpush2.msra.mxu0 0.0
        %353 = vmatprep.subr.mxu0 0.0
        %354 = vmatpush2.msra.mxu0 0.0
        %355 = vmatprep.subr.mxu0 0.0
        %356 = vmatpush2.msra.mxu0 0.0
        %357 = vmatprep.subr.mxu0 0.0
        %358 = vmatpush2.msra.mxu0 0.0
        %359 = vmatprep.subr.mxu0 0.0
        %360 = vmatpush2.msra.mxu0 0.0
        %361 = vmatprep.subr.mxu0 0.0
        %362 = vmatpush2.msra.mxu0 0.0
        %363 = vmatprep.subr.mxu0 0.0
        %364 = vmatpush2.msra.mxu0 0.0
        %365 = vmatprep.subr.mxu0 0.0
        %366 = vmatpush2.msra.mxu0 0.0
        %367 = vmatprep.subr.mxu0 0.0
        %368 = vmatpush2.msra.mxu0 0.0
        %369 = vmatprep.subr.mxu0 0.0
        %370 = vmatpush2.msra.mxu0 0.0
        %371 = vmatprep.subr.mxu0 0.0
        %372 = vmatpush2.msra.mxu0 0.0
        %373 = vmatprep.subr.mxu0 0.0
        %374 = vmatpush2.msra.mxu0 0.0
        %375 = vmatprep.subr.mxu0 0.0
        %376 = vmatpush2.msra.mxu0 0.0
        %377 = vmatprep.subr.mxu0 0.0
        %378 = vmatpush2.msra.mxu0 0.0
        %379 = vmatprep.subr.mxu0 0.0
        %380 = vmatpush2.msra.mxu0 0.0
        %381 = vmatprep.subr.mxu0 0.0
        %382 = vmatpush2.msra.mxu0 0.0
        %383 = vmatprep.mubr.f32.mxu0 0.0
        %384 = vmatmul.mubr.f32.gmra.mxu0 %v231
        %v385 = vpop.f32.mrf.mxu0
        %v386 = vadd.f32 0.0, %v385
        %v387 = vpop.f32.mrf.mxu0
        %388 = vmatprep.mubr.f32.mxu0 0.0
        %389 = vmatmul.mubr.f32.gmra.mxu0 %v232
        %v390 = vpop.f32.mrf.mxu0
        %v391 = vadd.f32 0.0, %v390
        %v392 = vpop.f32.mrf.mxu0
        %393 = vmatprep.mubr.f32.mxu0 0.0
        %394 = vmatmul.mubr.f32.gmra.mxu0 %v233
        %v395 = vpop.f32.mrf.mxu0
        %v396 = vadd.f32 0.0, %v395
        %v397 = vpop.f32.mrf.mxu0
        %398 = vmatprep.mubr.f32.mxu0 0.0
        %399 = vmatmul.mubr.f32.gmra.mxu0 %v234
        %v400 = vpop.f32.mrf.mxu0
        %v401 = vadd.f32 0.0, %v400
        %v402 = vpop.f32.mrf.mxu0
        %403 = vmatprep.mubr.f32.mxu0 0.0
        %404 = vmatmul.mubr.f32.gmra.mxu0 %v235
        %v405 = vpop.f32.mrf.mxu0
        %v406 = vadd.f32 0.0, %v405
        %v407 = vpop.f32.mrf.mxu0
        %408 = vmatprep.mubr.f32.mxu0 0.0
        %409 = vmatmul.mubr.f32.gmra.mxu0 %v236
        %v410 = vpop.f32.mrf.mxu0
        %v411 = vadd.f32 0.0, %v410
        %v412 = vpop.f32.mrf.mxu0
        %413 = vmatprep.mubr.f32.mxu0 0.0
        %414 = vmatmul.mubr.f32.gmra.mxu0 %v237
        %v415 = vpop.f32.mrf.mxu0
        %v416 = vadd.f32 0.0, %v415
        %v417 = vpop.f32.mrf.mxu0
        %418 = vmatprep.mubr.f32.mxu0 0.0
        %419 = vmatmul.mubr.f32.gmra.mxu0 %v238
        %v420 = vpop.f32.mrf.mxu0
        %v421 = vadd.f32 0.0, %v420
        %v422 = vpop.f32.mrf.mxu0
        %423 = vmatprep.mubr.f32.mxu0 0.0
        %424 = vmatmul.mubr.f32.gmra.mxu0 %v239
        %v425 = vpop.f32.mrf.mxu0
        %v426 = vadd.f32 0.0, %v425
        %v427 = vpop.f32.mrf.mxu0
        %428 = vmatprep.mubr.f32.mxu0 0.0
        %429 = vmatmul.mubr.f32.gmra.mxu0 %v240
        %v430 = vpop.f32.mrf.mxu0
        %v431 = vadd.f32 0.0, %v430
        %v432 = vpop.f32.mrf.mxu0
        %433 = vmatprep.mubr.f32.mxu0 0.0
        %434 = vmatmul.mubr.f32.gmra.mxu0 %v241
        %v435 = vpop.f32.mrf.mxu0
        %v436 = vadd.f32 0.0, %v435
        %v437 = vpop.f32.mrf.mxu0
        %438 = vmatprep.mubr.f32.mxu0 0.0
        %439 = vmatmul.mubr.f32.gmra.mxu0 %v242
        %v440 = vpop.f32.mrf.mxu0
        %v441 = vadd.f32 0.0, %v440
        %v442 = vpop.f32.mrf.mxu0
        %443 = vmatprep.mubr.f32.mxu0 0.0
        %444 = vmatmul.mubr.f32.gmra.mxu0 %v243
        %v445 = vpop.f32.mrf.mxu0
        %v446 = vadd.f32 0.0, %v445
        %v447 = vpop.f32.mrf.mxu0
        %448 = vmatprep.mubr.f32.mxu0 0.0
        %449 = vmatmul.mubr.f32.gmra.mxu0 %v244
        %v450 = vpop.f32.mrf.mxu0
        %v451 = vadd.f32 0.0, %v450
        %v452 = vpop.f32.mrf.mxu0
        %453 = vmatprep.mubr.f32.mxu0 0.0
        %454 = vmatmul.mubr.f32.gmra.mxu0 %v245
        %v455 = vpop.f32.mrf.mxu0
        %v456 = vadd.f32 0.0, %v455
        %v457 = vpop.f32.mrf.mxu0
        %458 = vmatprep.mubr.f32.mxu0 0.0
        %459 = vmatmul.mubr.f32.gmra.mxu0 %v246
        %v460 = vpop.f32.mrf.mxu0
        %v461 = vadd.f32 0.0, %v460
        %v462 = vpop.f32.mrf.mxu0
        %463 = vmatprep.mubr.f32.mxu0 0.0
        %464 = vmatmul.mubr.f32.gmra.mxu0 %v247
        %v465 = vpop.f32.mrf.mxu0
        %v466 = vadd.f32 0.0, %v465
        %v467 = vpop.f32.mrf.mxu0
        %468 = vmatprep.mubr.f32.mxu0 0.0
        %469 = vmatmul.mubr.f32.gmra.mxu0 %v248
        %v470 = vpop.f32.mrf.mxu0
        %v471 = vadd.f32 0.0, %v470
        %v472 = vpop.f32.mrf.mxu0
        %473 = vmatprep.mubr.f32.mxu0 0.0
        %474 = vmatmul.mubr.f32.gmra.mxu0 %v249
        %v475 = vpop.f32.mrf.mxu0
        %v476 = vadd.f32 0.0, %v475
        %v477 = vpop.f32.mrf.mxu0
        %478 = vmatprep.mubr.f32.mxu0 0.0
        %479 = vmatmul.mubr.f32.gmra.mxu0 %v250
        %v480 = vpop.f32.mrf.mxu0
        %v481 = vadd.f32 0.0, %v480
        %v482 = vpop.f32.mrf.mxu0
        %483 = vmatprep.mubr.f32.mxu0 0.0
        %484 = vmatmul.mubr.f32.gmra.mxu0 %v251
        %v485 = vpop.f32.mrf.mxu0
        %v486 = vadd.f32 0.0, %v485
        %v487 = vpop.f32.mrf.mxu0
        %488 = vmatprep.mubr.f32.mxu0 0.0
        %489 = vmatmul.mubr.f32.gmra.mxu0 %v252
        %v490 = vpop.f32.mrf.mxu0
        %v491 = vadd.f32 0.0, %v490
        %v492 = vpop.f32.mrf.mxu0
        %493 = vmatprep.mubr.f32.mxu0 0.0
        %494 = vmatmul.mubr.f32.gmra.mxu0 %v253
        %v495 = vpop.f32.mrf.mxu0
        %v496 = vadd.f32 0.0, %v495
        %v497 = vpop.f32.mrf.mxu0
        %498 = vmatprep.mubr.f32.mxu0 0.0
        %499 = vmatmul.mubr.f32.gmra.mxu0 %v254
        %v500 = vpop.f32.mrf.mxu0
        %v501 = vadd.f32 0.0, %v500
        %v502 = vpop.f32.mrf.mxu0
        %503 = vmatprep.mubr.f32.mxu0 0.0
        %504 = vmatmul.mubr.f32.gmra.mxu0 %v255
        %v505 = vpop.f32.mrf.mxu0
        %v506 = vadd.f32 0.0, %v505
        %v507 = vpop.f32.mrf.mxu0
        %508 = vmatprep.mubr.f32.mxu0 0.0
        %509 = vmatmul.mubr.f32.gmra.mxu0 %v256
        %v510 = vpop.f32.mrf.mxu0
        %v511 = vadd.f32 0.0, %v510
        %v512 = vpop.f32.mrf.mxu0
        %513 = vmatprep.mubr.f32.mxu0 0.0
        %514 = vmatmul.mubr.f32.gmra.mxu0 %v257
        %v515 = vpop.f32.mrf.mxu0
        %v516 = vadd.f32 0.0, %v515
        %v517 = vpop.f32.mrf.mxu0
        %518 = vmatprep.mubr.f32.mxu0 0.0
        %519 = vmatmul.mubr.f32.gmra.mxu0 %v258
        %v520 = vpop.f32.mrf.mxu0
        %v521 = vadd.f32 0.0, %v520
        %v522 = vpop.f32.mrf.mxu0
        %523 = vmatprep.mubr.f32.mxu0 0.0
        %524 = vmatmul.mubr.f32.gmra.mxu0 %v259
        %v525 = vpop.f32.mrf.mxu0
        %v526 = vadd.f32 0.0, %v525
        %v527 = vpop.f32.mrf.mxu0
        %528 = vmatprep.mubr.f32.mxu0 0.0
        %529 = vmatmul.mubr.f32.gmra.mxu0 %v260
        %v530 = vpop.f32.mrf.mxu0
        %v531 = vadd.f32 0.0, %v530
        %v532 = vpop.f32.mrf.mxu0
        %533 = vmatprep.mubr.f32.mxu0 0.0
        %534 = vmatmul.mubr.f32.gmra.mxu0 %v261
        %v535 = vpop.f32.mrf.mxu0
        %v536 = vadd.f32 0.0, %v535
        %v537 = vpop.f32.mrf.mxu0
        %538 = vmatprep.mubr.f32.mxu0 0.0
        %539 = vmatmul.mubr.f32.gmra.mxu0 %v262
        %v540 = vpop.f32.mrf.mxu0
        %v541 = vadd.f32 0.0, %v540
        %v542 = vpop.f32.mrf.mxu0
        %543 = vmatprep.mubr.f32.mxu0 0.0
        %544 = vmatmul.mubr.f32.gmra.mxu0 %v263
        %v545 = vpop.f32.mrf.mxu0
        %v546 = vadd.f32 0.0, %v545
        %v547 = vpop.f32.mrf.mxu0
        %548 = vmatprep.mubr.f32.mxu0 0.0
        %549 = vmatmul.mubr.f32.gmra.mxu0 %v264
        %v550 = vpop.f32.mrf.mxu0
        %v551 = vadd.f32 0.0, %v550
        %v552 = vpop.f32.mrf.mxu0
        %553 = vmatprep.mubr.f32.mxu0 0.0
        %554 = vmatmul.mubr.f32.gmra.mxu0 %v265
        %v555 = vpop.f32.mrf.mxu0
        %v556 = vadd.f32 0.0, %v555
        %v557 = vpop.f32.mrf.mxu0
        %558 = vmatprep.mubr.f32.mxu0 0.0
        %559 = vmatmul.mubr.f32.gmra.mxu0 %v266
        %v560 = vpop.f32.mrf.mxu0
        %v561 = vadd.f32 0.0, %v560
        %v562 = vpop.f32.mrf.mxu0
        %563 = vmatprep.mubr.f32.mxu0 0.0
        %564 = vmatmul.mubr.f32.gmra.mxu0 %v267
        %v565 = vpop.f32.mrf.mxu0
        %v566 = vadd.f32 0.0, %v565
        %v567 = vpop.f32.mrf.mxu0
        %568 = vmatprep.mubr.f32.mxu0 0.0
        %569 = vmatmul.mubr.f32.gmra.mxu0 %v268
        %v570 = vpop.f32.mrf.mxu0
        %v571 = vadd.f32 0.0, %v570
        %v572 = vpop.f32.mrf.mxu0
        %573 = vmatprep.mubr.f32.mxu0 0.0
        %574 = vmatmul.mubr.f32.gmra.mxu0 %v269
        %v575 = vpop.f32.mrf.mxu0
        %v576 = vadd.f32 0.0, %v575
        %v577 = vpop.f32.mrf.mxu0
        %578 = vmatprep.mubr.f32.mxu0 0.0
        %579 = vmatmul.mubr.f32.gmra.mxu0 %v270
        %v580 = vpop.f32.mrf.mxu0
        %v581 = vadd.f32 0.0, %v580
        %v582 = vpop.f32.mrf.mxu0
        %583 = vmatprep.mubr.f32.mxu0 0.0
        %584 = vmatmul.mubr.f32.gmra.mxu0 %v271
        %v585 = vpop.f32.mrf.mxu0
        %v586 = vadd.f32 0.0, %v585
        %v587 = vpop.f32.mrf.mxu0
        %588 = vmatprep.mubr.f32.mxu0 0.0
        %589 = vmatmul.mubr.f32.gmra.mxu0 %v272
        %v590 = vpop.f32.mrf.mxu0
        %v591 = vadd.f32 0.0, %v590
        %v592 = vpop.f32.mrf.mxu0
        %593 = vmatprep.mubr.f32.mxu0 0.0
        %594 = vmatmul.mubr.f32.gmra.mxu0 %v273
        %v595 = vpop.f32.mrf.mxu0
        %v596 = vadd.f32 0.0, %v595
        %v597 = vpop.f32.mrf.mxu0
        %598 = vmatprep.mubr.f32.mxu0 0.0
        %599 = vmatmul.mubr.f32.gmra.mxu0 %v274
        %v600 = vpop.f32.mrf.mxu0
        %v601 = vadd.f32 0.0, %v600
        %v602 = vpop.f32.mrf.mxu0
        %603 = vmatprep.mubr.f32.mxu0 0.0
        %604 = vmatmul.mubr.f32.gmra.mxu0 %v275
        %v605 = vpop.f32.mrf.mxu0
        %v606 = vadd.f32 0.0, %v605
        %v607 = vpop.f32.mrf.mxu0
        %608 = vmatprep.mubr.f32.mxu0 0.0
        %609 = vmatmul.mubr.f32.gmra.mxu0 %v276
        %v610 = vpop.f32.mrf.mxu0
        %v611 = vadd.f32 0.0, %v610
        %v612 = vpop.f32.mrf.mxu0
        %613 = vmatprep.mubr.f32.mxu0 0.0
        %614 = vmatmul.mubr.f32.gmra.mxu0 %v277
        %v615 = vpop.f32.mrf.mxu0
        %v616 = vadd.f32 0.0, %v615
        %v617 = vpop.f32.mrf.mxu0
        %618 = vmatprep.mubr.f32.mxu0 0.0
        %619 = vmatmul.mubr.f32.gmra.mxu0 %v278
        %v620 = vpop.f32.mrf.mxu0
        %v621 = vadd.f32 0.0, %v620
        %v622 = vpop.f32.mrf.mxu0
        %623 = vmatprep.mubr.f32.mxu0 0.0
        %624 = vmatmul.mubr.f32.gmra.mxu0 %v279
        %v625 = vpop.f32.mrf.mxu0
        %v626 = vadd.f32 0.0, %v625
        %v627 = vpop.f32.mrf.mxu0
        %628 = vmatprep.mubr.f32.mxu0 0.0
        %629 = vmatmul.mubr.f32.gmra.mxu0 %v280
        %v630 = vpop.f32.mrf.mxu0
        %v631 = vadd.f32 0.0, %v630
        %v632 = vpop.f32.mrf.mxu0
        %633 = vmatprep.mubr.f32.mxu0 0.0
        %634 = vmatmul.mubr.f32.gmra.mxu0 %v281
        %v635 = vpop.f32.mrf.mxu0
        %v636 = vadd.f32 0.0, %v635
        %v637 = vpop.f32.mrf.mxu0
        %638 = vmatprep.mubr.f32.mxu0 0.0
        %639 = vmatmul.mubr.f32.gmra.mxu0 %v282
        %v640 = vpop.f32.mrf.mxu0
        %v641 = vadd.f32 0.0, %v640
        %v642 = vpop.f32.mrf.mxu0
        %643 = vmatprep.mubr.f32.mxu0 0.0
        %644 = vmatmul.mubr.f32.gmra.mxu0 %v283
        %v645 = vpop.f32.mrf.mxu0
        %v646 = vadd.f32 0.0, %v645
        %v647 = vpop.f32.mrf.mxu0
        %648 = vmatprep.mubr.f32.mxu0 0.0
        %649 = vmatmul.mubr.f32.gmra.mxu0 %v284
        %v650 = vpop.f32.mrf.mxu0
        %v651 = vadd.f32 0.0, %v650
        %v652 = vpop.f32.mrf.mxu0
        %653 = vmatprep.mubr.f32.mxu0 0.0
        %654 = vmatmul.mubr.f32.gmra.mxu0 %v285
        %v655 = vpop.f32.mrf.mxu0
        %v656 = vadd.f32 0.0, %v655
        %v657 = vpop.f32.mrf.mxu0
        %658 = vmatprep.mubr.f32.mxu0 0.0
        %659 = vmatmul.mubr.f32.gmra.mxu0 %v286
        %v660 = vpop.f32.mrf.mxu0
        %v661 = vadd.f32 0.0, %v660
        %v662 = vpop.f32.mrf.mxu0
        %663 = vmatprep.mubr.f32.mxu0 0.0
        %664 = vmatmul.mubr.f32.gmra.mxu0 %v287
        %v665 = vpop.f32.mrf.mxu0
        %v666 = vadd.f32 0.0, %v665
        %v667 = vpop.f32.mrf.mxu0
        %668 = vmatprep.mubr.f32.mxu0 0.0
        %669 = vmatmul.mubr.f32.gmra.mxu0 %v288
        %v670 = vpop.f32.mrf.mxu0
        %v671 = vadd.f32 0.0, %v670
        %v672 = vpop.f32.mrf.mxu0
        %673 = vmatprep.mubr.f32.mxu0 0.0
        %674 = vmatmul.mubr.f32.gmra.mxu0 %v289
        %v675 = vpop.f32.mrf.mxu0
        %v676 = vadd.f32 0.0, %v675
        %v677 = vpop.f32.mrf.mxu0
        %678 = vmatprep.mubr.f32.mxu0 0.0
        %679 = vmatmul.mubr.f32.gmra.mxu0 %v290
        %v680 = vpop.f32.mrf.mxu0
        %v681 = vadd.f32 0.0, %v680
        %v682 = vpop.f32.mrf.mxu0
        %683 = vmatprep.mubr.f32.mxu0 0.0
        %684 = vmatmul.mubr.f32.gmra.mxu0 %v291
        %v685 = vpop.f32.mrf.mxu0
        %v686 = vadd.f32 0.0, %v685
        %v687 = vpop.f32.mrf.mxu0
        %688 = vmatprep.mubr.f32.mxu0 0.0
        %689 = vmatmul.mubr.f32.gmra.mxu0 %v292
        %v690 = vpop.f32.mrf.mxu0
        %v691 = vadd.f32 0.0, %v690
        %v692 = vpop.f32.mrf.mxu0
        %693 = vmatprep.mubr.f32.mxu0 0.0
        %694 = vmatmul.mubr.f32.gmra.mxu0 %v293
        %v695 = vpop.f32.mrf.mxu0
        %v696 = vadd.f32 0.0, %v695
        %v697 = vpop.f32.mrf.mxu0
        %698 = vmatprep.mubr.f32.mxu0 0.0
        %699 = vmatmul.mubr.f32.gmra.mxu0 %v294
        %v700 = vpop.f32.mrf.mxu0
        %v701 = vadd.f32 0.0, %v700
        %v702 = vpop.f32.mrf.mxu0
        %703 = vmatprep.mubr.f32.mxu0 0.0
        %704 = vmatmul.mubr.f32.gmra.mxu0 %v295
        %v705 = vpop.f32.mrf.mxu0
        %v706 = vadd.f32 0.0, %v705
        %v707 = vpop.f32.mrf.mxu0
        %708 = vmatprep.mubr.f32.mxu0 0.0
        %709 = vmatmul.mubr.f32.gmra.mxu0 %v296
        %v710 = vpop.f32.mrf.mxu0
        %v711 = vadd.f32 0.0, %v710
        %v712 = vpop.f32.mrf.mxu0
        %713 = vmatprep.mubr.f32.mxu0 0.0
        %714 = vmatmul.mubr.f32.gmra.mxu0 %v297
        %v715 = vpop.f32.mrf.mxu0
        %v716 = vadd.f32 0.0, %v715
        %v717 = vpop.f32.mrf.mxu0
        %718 = vmatprep.mubr.f32.mxu0 0.0
        %719 = vmatmul.mubr.f32.gmra.mxu0 %v298
        %v720 = vpop.f32.mrf.mxu0
        %v721 = vadd.f32 0.0, %v720
        %v722 = vpop.f32.mrf.mxu0
        %723 = vmatprep.mubr.f32.mxu0 0.0
        %724 = vmatmul.mubr.f32.gmra.mxu0 %v299
        %v725 = vpop.f32.mrf.mxu0
        %v726 = vadd.f32 0.0, %v725
        %v727 = vpop.f32.mrf.mxu0
        %728 = vmatprep.mubr.f32.mxu0 0.0
        %729 = vmatmul.mubr.f32.gmra.mxu0 %v300
        %v730 = vpop.f32.mrf.mxu0
        %v731 = vadd.f32 0.0, %v730
        %v732 = vpop.f32.mrf.mxu0
        %733 = vmatprep.mubr.f32.mxu0 0.0
        %734 = vmatmul.mubr.f32.gmra.mxu0 %v301
        %v735 = vpop.f32.mrf.mxu0
        %v736 = vadd.f32 0.0, %v735
        %v737 = vpop.f32.mrf.mxu0
        %738 = vmatprep.mubr.f32.mxu0 0.0
        %739 = vmatmul.mubr.f32.gmra.mxu0 %v302
        %v740 = vpop.f32.mrf.mxu0
        %v741 = vadd.f32 0.0, %v740
        %v742 = vpop.f32.mrf.mxu0
        %743 = vdwg.mxu0
        %v744 = vmax.f32 %v386, %v476
        %v745 = vmax.f32 %v391, %v481
        %v746 = vmax.f32 %v396, %v486
        %v747 = vmax.f32 %v401, %v491
        %v748 = vmax.f32 %v406, %v496
        %v749 = vmax.f32 %v411, %v501
        %v750 = vmax.f32 %v416, %v506
        %v751 = vmax.f32 %v421, %v511
        %v752 = vmax.f32 %v426, %v516
        %v753 = vmax.f32 %v431, %v521
        %v754 = vmax.f32 %v436, %v526
        %v755 = vmax.f32 %v441, %v531
        %v756 = vmax.f32 %v446, %v536
        %v757 = vmax.f32 %v451, %v541
        %v758 = vmax.f32 %v456, %v546
        %v759 = vmax.f32 %v461, %v551
        %v760 = vmax.f32 %v466, %v556
        %v761 = vmax.f32 %v471, %v561
        %v762 = vmax.f32 %v566, %v656
        %v763 = vmax.f32 %v571, %v661
        %v764 = vmax.f32 %v576, %v666
        %v765 = vmax.f32 %v581, %v671
        %v766 = vmax.f32 %v586, %v676
        %v767 = vmax.f32 %v591, %v681
        %v768 = vmax.f32 %v596, %v686
        %v769 = vmax.f32 %v601, %v691
        %v770 = vmax.f32 %v606, %v696
        %v771 = vmax.f32 %v611, %v701
        %v772 = vmax.f32 %v616, %v706
        %v773 = vmax.f32 %v621, %v711
        %v774 = vmax.f32 %v626, %v716
        %v775 = vmax.f32 %v631, %v721
        %v776 = vmax.f32 %v636, %v726
        %v777 = vmax.f32 %v641, %v731
        %v778 = vmax.f32 %v646, %v736
        %v779 = vmax.f32 %v651, %v741
        %v780 = vmax.f32 %v744, %v762
        %v781 = vmax.f32 %v745, %v763
        %v782 = vmax.f32 %v746, %v764
        %v783 = vmax.f32 %v747, %v765
        %v784 = vmax.f32 %v748, %v766
        %v785 = vmax.f32 %v749, %v767
        %v786 = vmax.f32 %v750, %v768
        %v787 = vmax.f32 %v751, %v769
        %v788 = vmax.f32 %v752, %v770
        %v789 = vmax.f32 %v753, %v771
        %v790 = vmax.f32 %v754, %v772
        %v791 = vmax.f32 %v755, %v773
        %v792 = vmax.f32 %v756, %v774
        %v793 = vmax.f32 %v757, %v775
        %v794 = vmax.f32 %v758, %v776
        %v795 = vmax.f32 %v759, %v777
        %v796 = vmax.f32 %v760, %v778
        %v797 = vmax.f32 %v761, %v779
        %v798 = vld [vmem:[%s2] sm:$0x1]
        %v800 = vlaneseq
        %v801 = vshrl.u32 %v800, 7
        %v802 = vsub.s32 0, %v801
        %v803 = vrot.slane %v798, %v802
        %v805 = vadd.f32 %v780, %v803
        %v806 = vadd.f32 %v781, %v803
        %v807 = vadd.f32 %v782, %v803
        %v808 = vadd.f32 %v783, %v803
        %v809 = vadd.f32 %v784, %v803
        %v810 = vadd.f32 %v785, %v803
        %v811 = vadd.f32 %v786, %v803
        %v812 = vadd.f32 %v787, %v803
        %v813 = vadd.f32 %v788, %v803
        %v814 = vadd.f32 %v789, %v803
        %v815 = vadd.f32 %v790, %v803
        %v816 = vadd.f32 %v791, %v803
        %v817 = vadd.f32 %v792, %v803
        %v818 = vadd.f32 %v793, %v803
        %v819 = vadd.f32 %v794, %v803
        %v820 = vadd.f32 %v795, %v803
        %v821 = vadd.f32 %v796, %v803
        %v822 = vadd.f32 %v797, %v803
        %v823 = vmax.f32 %v805, 0.0
        %v824 = vmax.f32 %v806, 0.0
        %v825 = vmax.f32 %v807, 0.0
        %v826 = vmax.f32 %v808, 0.0
        %v827 = vmax.f32 %v809, 0.0
        %v828 = vmax.f32 %v810, 0.0
        %v829 = vmax.f32 %v811, 0.0
        %v830 = vmax.f32 %v812, 0.0
        %v831 = vmax.f32 %v813, 0.0
        %v832 = vmax.f32 %v814, 0.0
        %v833 = vmax.f32 %v815, 0.0
        %v834 = vmax.f32 %v816, 0.0
        %v835 = vmax.f32 %v817, 0.0
        %v836 = vmax.f32 %v818, 0.0
        %v837 = vmax.f32 %v819, 0.0
        %v838 = vmax.f32 %v820, 0.0
        %v839 = vmax.f32 %v821, 0.0
        %v840 = vmax.f32 %v822, 0.0
        %841 = vst [vmem:[%s228] sm:$0xff] %v823
        %842 = vst [vmem:[%s228 + $0x8] sm:$0xff] %v824
        %843 = vst [vmem:[%s228 + $0x10] sm:$0xff] %v825
        %844 = vst [vmem:[%s228 + $0x18] sm:$0xff] %v826
        %845 = vst [vmem:[%s228 + $0x20] sm:$0xff] %v827
        %846 = vst [vmem:[%s228 + $0x28] sm:$0xff] %v828
        %847 = vst [vmem:[%s228 + $0x30] sm:$0xff] %v829
        %848 = vst [vmem:[%s228 + $0x38] sm:$0xff] %v830
        %849 = vst [vmem:[%s228 + $0x40] sm:$0xff] %v831
        %850 = vst [vmem:[%s228 + $0x48] sm:$0xff] %v832
        %851 = vst [vmem:[%s228 + $0x50] sm:$0xff] %v833
        %852 = vst [vmem:[%s228 + $0x58] sm:$0xff] %v834
        %853 = vst [vmem:[%s228 + $0x60] sm:$0xff] %v835
        %854 = vst [vmem:[%s228 + $0x68] sm:$0xff] %v836
        %855 = vst [vmem:[%s228 + $0x70] sm:$0xff] %v837
        %856 = vst [vmem:[%s228 + $0x78] sm:$0xff] %v838
        %857 = vst [vmem:[%s228 + $0x80] sm:$0xff] %v839
        %858 = vst [vmem:[%s228 + $0x88] sm:$0xff] %v840
        %s859 = sand.u32 %s97, 1
        %s860 = scalar_lea.sflag [#allocation4], %s859
        %s861 = sand.u32 %s97, 1
        %s862 = smul.addr %s861, 144
        %s863 = scalar_lea.vmem [#allocation7], %s862
        // Predicated region
        $region41: #{tpu_custom_call.1} parent=31 // pred_check
          %p864 = pneg %p107
        $region42: #{tpu_custom_call.1} parent=31 // pred_check_branch
          %866 = sbr.rel (%p864) target = $region44
        $region43: #{tpu_custom_call.1} parent=31 // pred_region
          %s867 = smul.u32 18, %s21
          %s869 = ssub.s32 2304, 2304
          %870 = vsyncadd %s860, %s869
          %s871 = smul.addr %s867, 128
          %s872 = scalar_lea.hbm %s3, %s871
          %s873 = sshll.u32 %s863, 4
          %s874 = int_to_ptr.vmem [resolvable:$true] %s873
          %879 = dma.vmem_to_hbm [thread:$0]  %s874, 2304, %s872, %s860, 128, 128, 8
        $region44: #{tpu_custom_call.1} parent=31 // pred_fallthru
          _
      $region32: #{tpu_custom_call.1} parent=5 // pred_fallthru
        _
      %p880 = scmp.le.s32.totalorder 2, %s16
      // Predicated region
      $region45: #{tpu_custom_call.1} parent=5 // pred_check
        %p881 = pneg %p880
      $region46: #{tpu_custom_call.1} parent=5 // pred_check_branch
        %883 = sbr.rel (%p881) target = $region48
      $region47: #{tpu_custom_call.1} parent=5 // pred_region
        %s884 = ssub.s32 %s16, 2
        // Predicated region
        $region49: #{tpu_custom_call.1} parent=47 // pred_check
          %p885 = pneg %p113
        $region50: #{tpu_custom_call.1} parent=47 // pred_check_branch
          %887 = sbr.rel (%p885) target = $region52
        $region51: #{tpu_custom_call.1} parent=47 // pred_region
          %s888 = sand.u32 %s98, 1
          %s889 = scalar_lea.sflag [#allocation4], %s888
          %s890 = sand.u32 %s98, 1
          %s891 = smul.addr %s890, 144
          %s892 = scalar_lea.vmem [#allocation7], %s891
          %893 = dma.done %s889, 2304
        $region52: #{tpu_custom_call.1} parent=47 // pred_fallthru
          _
      $region48: #{tpu_custom_call.1} parent=5 // pred_fallthru
        _
    $region6: #{tpu_custom_call.1} parent=1 // loop_footer
      %s20 = sadd.s32 1, %s16
    $region7: #{tpu_custom_call.1} parent=1 // loop_footer_branch
      %15 = sbr.rel target = $region3
    $region8: #{tpu_custom_call.1} parent=1 // loop_exit
      _
    %894 = vsyncpa [#allocation3], 1
    %s895 = scalar_lea.sflag [#allocation3], 1
    %896 = vsyncpa %s895, 1
    %897 = vsyncpa [#allocation6], 1
    %898 = vsyncpa [#allocation4], 1
    %s899 = scalar_lea.sflag [#allocation4], 1
    %900 = vsyncpa %s899, 1

</llo_original>
